<compile_context>
chip_gen: v7x
topology: tpu7x:2x2x1
jax: 0.10.0
libtpu: 0.0.40
codegen_flags: <defaults>
</compile_context>

<pallas_src>
import math

import jax
import jax.numpy as jnp
from jax.experimental import pallas as pl
from jax.experimental.pallas import tpu as pltpu


def _round_up(x: int, m: int) -> int:
    return ((x + m - 1) // m) * m


def _pick_tile(dim: int, preferred: int, align: int):
    """Largest legal tile <= preferred for a dimension of size `dim`.

    Returns (tile, divides).  `tile` is either the full dim (always a legal
    block shape when dim <= preferred), a divisor of `dim` that is a multiple
    of `align`, or `preferred` itself when no aligned divisor exists (the
    caller then handles the ragged edge / padding).
    """
    if dim <= preferred:
        return dim, True
    t = (preferred // align) * align
    while t >= align:
        if dim % t == 0:
            return t, True
        t -= align
    return preferred, False


def _vmem_budget():
    """(vmem_limit_bytes, tm, tn, tk) tuned per TPU generation."""
    try:
        cap = pltpu.get_tpu_info().vmem_capacity_bytes
    except Exception:
        cap = 64 << 20  # conservative if the chip cannot be queried
    if cap >= (100 << 20):        # v5e / v6e: 128 MiB physical VMEM
        return 96 << 20, 1024, 1024, 1024
    else:                         # v7x: 64 MiB physical VMEM — leave headroom
        return 48 << 20, 512, 1024, 1024


def _make_kernel(has_bias: bool, direct_acc: bool):
    """Build the (i, j, k)-grid matmul kernel body.

    direct_acc=True  -> output dtype is f32; accumulate straight into o_ref.
    direct_acc=False -> f32 VMEM scratch accumulator, downcast in epilogue.
    """
    if direct_acc:
        def kernel(*refs):
            if has_bias:
                x_ref, w_ref, b_ref, o_ref = refs
            else:
                x_ref, w_ref, o_ref = refs
            k = pl.program_id(2)

            @pl.when(k == 0)
            def _():
                o_ref[...] = jnp.zeros_like(o_ref)

            o_ref[...] += jnp.dot(x_ref[...], w_ref[...],
                                  preferred_element_type=jnp.float32)

            if has_bias:
                @pl.when(k == pl.num_programs(2) - 1)
                def _():
                    o_ref[...] += b_ref[...].astype(o_ref.dtype)
        return kernel

    def kernel(*refs):
        if has_bias:
            x_ref, w_ref, b_ref, o_ref, acc_ref = refs
        else:
            x_ref, w_ref, o_ref, acc_ref = refs
        k = pl.program_id(2)

        @pl.when(k == 0)
        def _():
            acc_ref[...] = jnp.zeros_like(acc_ref)

        acc_ref[...] += jnp.dot(x_ref[...], w_ref[...],
                                preferred_element_type=jnp.float32)

        @pl.when(k == pl.num_programs(2) - 1)
        def _():
            y = acc_ref[...]
            if has_bias:
                y = y + b_ref[...].astype(jnp.float32)
            o_ref[...] = y.astype(o_ref.dtype)
    return kernel


def pallas_linear(x: jax.Array, w_kn: jax.Array, bias: jax.Array | None = None,
                  *, tm: int | None = None, tn: int | None = None,
                  tk: int | None = None, compute_dtype=None,
                  out_dtype=None) -> jax.Array:
    """y = x @ w_kn + bias  (== F.linear(x, w_kn.T, bias)).

    `w_kn` has shape (in_features, out_features), i.e. the transpose of
    torch.nn.Linear's weight.  Store it this way once at init/load time so the
    forward pass needs no per-call HBM transpose.  `compute_dtype` (e.g.
    jnp.bfloat16) casts operands before the MXU; accumulation stays f32.
    """
    in_features, out_features = w_kn.shape
    assert x.shape[-1] == in_features
    lead = x.shape[:-1]
    m = math.prod(lead) if lead else 1

    if out_dtype is None:
        out_dtype = x.dtype
    if compute_dtype is not None:
        # NOTE: for production, store the weight in compute_dtype to avoid
        # this per-call cast as well.
        x = x.astype(compute_dtype)
        w_kn = w_kn.astype(compute_dtype)

    x2 = x.reshape(m, in_features)

    vmem_limit, tm_d, tn_d, tk_d = _vmem_budget()
    tm = tm or tm_d
    tn = tn or tn_d
    tk = tk or tk_d

    tm_, _ = _pick_tile(m, tm, 8)                  # sublane granularity
    tn_, _ = _pick_tile(out_features, tn, 128)     # lane granularity
    tk_, k_divides = _pick_tile(in_features, tk, 128)

    # Only the contraction dim must be exact: zero-pad K when no aligned tile
    # divides it (padded x columns / W rows contribute exactly zero).
    kp = in_features
    if not k_divides:
        kp = _round_up(in_features, tk_)
        x2 = jnp.pad(x2, ((0, 0), (0, kp - in_features)))
        w_kn = jnp.pad(w_kn, ((0, kp - in_features), (0, 0)))
    # M / N ragged edges need no padding: cdiv grid + masked edge blocks, and
    # the unpadded out_shape means out-of-range output elements never exist.

    grid = (pl.cdiv(m, tm_), pl.cdiv(out_features, tn_), kp // tk_)

    has_bias = bias is not None
    direct_acc = jnp.dtype(out_dtype) == jnp.dtype(jnp.float32)
    kernel = _make_kernel(has_bias, direct_acc)

    in_specs = [
        pl.BlockSpec((tm_, tk_), lambda i, j, k: (i, k)),
        pl.BlockSpec((tk_, tn_), lambda i, j, k: (k, j)),
    ]
    args = [x2, w_kn]
    if has_bias:
        in_specs.append(pl.BlockSpec((1, tn_), lambda i, j, k: (0, j)))
        args.append(bias.reshape(1, out_features))

    scratch_shapes = () if direct_acc else [pltpu.VMEM((tm_, tn_), jnp.float32)]

    # Bytes include operand re-reads across the parallel grid
    # (x is streamed once per N-block, W once per M-block).
    x_bytes = grid[1] * m * kp * x2.dtype.itemsize
    w_bytes = grid[0] * kp * out_features * w_kn.dtype.itemsize
    o_bytes = m * out_features * jnp.dtype(out_dtype).itemsize
    b_bytes = out_features * bias.dtype.itemsize if has_bias else 0
    cost = pl.CostEstimate(
        flops=2 * m * kp * out_features,
        transcendentals=0,
        bytes_accessed=x_bytes + w_bytes + o_bytes + b_bytes,
    )

    out = pl.pallas_call(
        kernel,
        out_shape=jax.ShapeDtypeStruct((m, out_features), out_dtype),
        grid_spec=pltpu.PrefetchScalarGridSpec(
            num_scalar_prefetch=0,
            grid=grid,
            in_specs=in_specs,
            out_specs=pl.BlockSpec((tm_, tn_), lambda i, j, k: (i, j)),
            scratch_shapes=scratch_shapes,
        ),
        compiler_params=pltpu.CompilerParams(
            dimension_semantics=("parallel", "parallel", "arbitrary"),
            vmem_limit_bytes=vmem_limit,
        ),
        cost_estimate=cost,
    )(*args)

    return out.reshape(*lead, out_features)


def init_linear_params(key, in_features: int, out_features: int,
                       dtype=jnp.float32):
    """Re-implementation of Linear.reset_parameters().

    kaiming_uniform_(a=sqrt(5)) on an (out, in) weight gives
    bound = 1/sqrt(fan_in); bias ~ U(-bound, bound).  The weight is returned
    PRE-TRANSPOSED as (in_features, out_features) so the forward pass never
    transposes (uniform init is layout-agnostic, so the distribution matches).
    """
    kw, kb = jax.random.split(key)
    bound = 1.0 / math.sqrt(in_features) if in_features > 0 else 0.0
    w_kn = jax.random.uniform(kw, (in_features, out_features),
                              dtype=dtype, minval=-bound, maxval=bound)
    bias = jax.random.uniform(kb, (out_features,),
                              dtype=dtype, minval=-bound, maxval=bound)
    return w_kn, bias


if __name__ == "__main__":
    key = jax.random.PRNGKey(0)
    k_x, k_p, k_x2, k_p2 = jax.random.split(key, 4)

    # Small shapes consistent with the module: batch=2, seq=8, 32 -> 64.
    batch, seq, in_f, out_f = 2, 8, 32, 64
    x = jax.random.normal(k_x, (batch, seq, in_f), dtype=jnp.float32)
    w_kn, bias = init_linear_params(k_p, in_f, out_f, dtype=jnp.float32)

    y = jax.block_until_ready(pallas_linear(x, w_kn, bias))
    y_ref = x @ w_kn + bias
    assert y.shape == (batch, seq, out_f)
    assert jnp.allclose(y, y_ref, atol=1e-2, rtol=1e-2)

    # No-bias path (dedicated kernel, no zeros-bias DMA).
    y_nb = jax.block_until_ready(pallas_linear(x, w_kn, None))
    assert jnp.allclose(y_nb, x @ w_kn, atol=1e-2, rtol=1e-2)

    # Tiled / ragged config: M=900 (ragged vs tm=128), K=640 (5 K-steps),
    # N=384 (3 N-blocks) — exercises accumulation + masked edge blocks.
    x_big = jax.random.normal(k_x2, (3, 300, 640), dtype=jnp.float32)
    w_big, b_big = init_linear_params(k_p2, 640, 384, dtype=jnp.float32)
    y_big = jax.block_until_ready(
        pallas_linear(x_big, w_big, b_big, tm=128, tn=128, tk=256))
    y_big_ref = x_big @ w_big + b_big
    assert jnp.allclose(y_big, y_big_ref, atol=2e-2, rtol=2e-2)

    # K=1000 with tk=256 has no 128-aligned divisor -> zero-pad-K fallback.
    k_x3, k_p3 = jax.random.split(k_p2)
    x_odd = jax.random.normal(k_x3, (4, 50, 1000), dtype=jnp.float32)
    w_odd, b_odd = init_linear_params(k_p3, 1000, 256, dtype=jnp.float32)
    y_odd = jax.block_until_ready(
        pallas_linear(x_odd, w_odd, b_odd, tm=128, tn=128, tk=256))
    assert jnp.allclose(y_odd, x_odd @ w_odd + b_odd, atol=2e-2, rtol=2e-2)

    # bf16 operand path (f32 accumulation + f32 output), looser tolerance.
    y_bf16 = jax.block_until_ready(
        pallas_linear(x_big, w_big, b_big, compute_dtype=jnp.bfloat16))
    assert y_bf16.dtype == jnp.float32
    assert jnp.allclose(y_bf16, y_big_ref, atol=0.2, rtol=5e-2)

    print("KERNEL_OK")
</pallas_src>

<mosaic_0001>
module attributes {stable_mosaic.version = 11 : i64} {
  func.func @kernel(%arg0: i32, %arg1: i32, %arg2: i32, %arg3: memref<16x32xf32, #tpu.memory_space<vmem>>, %arg4: memref<32x64xf32, #tpu.memory_space<vmem>>, %arg5: memref<1x64xf32, #tpu.memory_space<vmem>>, %arg6: memref<16x64xf32, #tpu.memory_space<vmem>>) attributes {dimension_semantics = [#tpu.dimension_semantics<parallel>, #tpu.dimension_semantics<parallel>, #tpu.dimension_semantics<arbitrary>], iteration_bounds = array<i64: 1, 1, 1>, scalar_prefetch = 0 : i64, scratch_operands = 0 : i64, tpu.core_type = #tpu.core_type<tc>, window_params = [{transform_indices = @transform_0, window_bounds = array<i64: 16, 32>}, {transform_indices = @transform_1, window_bounds = array<i64: 32, 64>}, {transform_indices = @transform_2, window_bounds = array<i64: 1, 64>}, {transform_indices = @transform_3, window_bounds = array<i64: 16, 64>}]} {
    %c0_i32 = arith.constant 0 : i32
    %0 = arith.cmpi eq, %arg2, %c0_i32 : i32
    %1 = arith.extui %0 : i1 to i32
    %c0_i32_0 = arith.constant 0 : i32
    %2 = arith.cmpi ne, %1, %c0_i32_0 : i32
    scf.if %2 {
      %cst_10 = arith.constant 0.000000e+00 : f32
      %12 = vector.broadcast %cst_10 : f32 to vector<16x64xf32>
      %c0_11 = arith.constant 0 : index
      %c0_12 = arith.constant 0 : index
      %13 = vector.load %arg6[%c0_11, %c0_12] : memref<16x64xf32, #tpu.memory_space<vmem>>, vector<16x64xf32>
      tpu.vector_store %arg6[%c0_11, %c0_12], %12 {strides = array<i32>} : memref<16x64xf32, #tpu.memory_space<vmem>>, vector<16x64xf32>,
    } else {
    }
    %c0 = arith.constant 0 : index
    %c0_1 = arith.constant 0 : index
    %3 = vector.load %arg6[%c0, %c0_1] : memref<16x64xf32, #tpu.memory_space<vmem>>, vector<16x64xf32>
    %c0_2 = arith.constant 0 : index
    %c0_3 = arith.constant 0 : index
    %4 = vector.load %arg3[%c0_2, %c0_3] : memref<16x32xf32, #tpu.memory_space<vmem>>, vector<16x32xf32>
    %c0_4 = arith.constant 0 : index
    %c0_5 = arith.constant 0 : index
    %5 = vector.load %arg4[%c0_4, %c0_5] : memref<32x64xf32, #tpu.memory_space<vmem>>, vector<32x64xf32>
    %cst = arith.constant dense<0.000000e+00> : vector<16x64xf32>
    %6 = tpu.matmul %4, %5, %cst {dimension_numbers = #tpu.dot_dimension_numbers<[1], [0], [0], [1], [0, 0, 1, 1], [], []>} : vector<16x32xf32>, vector<32x64xf32>, vector<16x64xf32> -> vector<16x64xf32>
    %7 = arith.addf %3, %6 : vector<16x64xf32>
    %c0_6 = arith.constant 0 : index
    %c0_7 = arith.constant 0 : index
    %8 = vector.load %arg6[%c0_6, %c0_7] : memref<16x64xf32, #tpu.memory_space<vmem>>, vector<16x64xf32>
    tpu.vector_store %arg6[%c0_6, %c0_7], %7 {strides = array<i32>} : memref<16x64xf32, #tpu.memory_space<vmem>>, vector<16x64xf32>,
    %c0_i32_8 = arith.constant 0 : i32
    %9 = arith.cmpi eq, %arg2, %c0_i32_8 : i32
    %10 = arith.extui %9 : i1 to i32
    %c0_i32_9 = arith.constant 0 : i32
    %11 = arith.cmpi ne, %10, %c0_i32_9 : i32
    scf.if %11 {
      %c0_10 = arith.constant 0 : index
      %c0_11 = arith.constant 0 : index
      %12 = vector.load %arg6[%c0_10, %c0_11] : memref<16x64xf32, #tpu.memory_space<vmem>>, vector<16x64xf32>
      %c0_12 = arith.constant 0 : index
      %c0_13 = arith.constant 0 : index
      %13 = vector.load %arg5[%c0_12, %c0_13] : memref<1x64xf32, #tpu.memory_space<vmem>>, vector<1x64xf32>
      %14 = vector.broadcast %13 : vector<1x64xf32> to vector<16x64xf32>
      %15 = arith.addf %12, %14 : vector<16x64xf32>
      %c0_14 = arith.constant 0 : index
      %c0_15 = arith.constant 0 : index
      %16 = vector.load %arg6[%c0_14, %c0_15] : memref<16x64xf32, #tpu.memory_space<vmem>>, vector<16x64xf32>
      tpu.vector_store %arg6[%c0_14, %c0_15], %15 {strides = array<i32>} : memref<16x64xf32, #tpu.memory_space<vmem>>, vector<16x64xf32>,
    } else {
    }
    return
  }
  func.func @transform_0(%arg0: i32, %arg1: i32, %arg2: i32) -> (i32, i32) {
    %c0_i32 = arith.constant 0 : i32
    return %arg0, %arg2 : i32, i32
  }
  func.func @transform_1(%arg0: i32, %arg1: i32, %arg2: i32) -> (i32, i32) {
    %c0_i32 = arith.constant 0 : i32
    return %arg2, %arg1 : i32, i32
  }
  func.func @transform_2(%arg0: i32, %arg1: i32, %arg2: i32) -> (i32, i32) {
    %c0_i32 = arith.constant 0 : i32
    %c0_i32_0 = arith.constant 0 : i32
    return %c0_i32, %arg1 : i32, i32
  }
  func.func @transform_3(%arg0: i32, %arg1: i32, %arg2: i32) -> (i32, i32) {
    %c0_i32 = arith.constant 0 : i32
    return %arg0, %arg1 : i32, i32
  }
}

</mosaic_0001>

<llo_original>
// kernel: tpu_custom_call.1
$region0: #{tpu_custom_call.1}
  #allocation0 [shape = 'u32[]', space=smem, size = 0x4, offset = 0x4, fixed_abs, tag = 'smem constant byte address 0x4 - core index']
  #allocation1 [shape = 'u32[144,128]{1,0:T(1,128)}', space=vmem, size = 0x12000, scoped, tag = 'internal scratch']
  %s0 = inlined_call_operand.hbm [shape: f32[16,32], index: 0, kind: input, shape index: {}]
  %s1 = inlined_call_operand.hbm [shape: f32[32,64], index: 1, kind: input, shape index: {}]
  %s2 = inlined_call_operand.vmem [shape: f32[1,64], index: 2, kind: input, shape index: {}]
  %s3 = inlined_call_operand.hbm [shape: f32[16,64], index: 3, kind: output, shape index: {}]
  %s4 = sld [smem:[#allocation0]]
  $region38: #{tpu_custom_call.1} parent=0
    _
  %s6 = ssub.s32 1, %s4
  %s7 = scalar_select 0, %s6, %s4
  $region1: #{tpu_custom_call.1} parent=0
    #allocation2 [shape = 'u8[8192]{0}', space=vmem, size = 0x2000, scoped, tag = 'input window, operand 0, single buffered']
    #allocation3 [shape = 's32[1]{0}', space=sflag, size = 0x4, scoped, tag = 'scoped memory for tpu_custom_call.1']
    #allocation4 [shape = 's32[1]{0}', space=sflag, size = 0x4, scoped, tag = 'scoped memory for tpu_custom_call.1']
    #allocation5 [shape = 'u8[16384]{0}', space=vmem, size = 0x4000, scoped, tag = 'input window, operand 1, single buffered']
    #allocation6 [shape = 's32[1]{0}', space=sflag, size = 0x4, scoped, tag = 'scoped memory for tpu_custom_call.1']
    #allocation7 [shape = 'u8[8192]{0}', space=vmem, size = 0x2000, scoped, tag = 'output window, operand 0, single buffered']
    %8 = vsyncpa [#allocation3], 0
    %9 = vsyncpa [#allocation6], 0
    %10 = vsyncpa [#allocation4], 0
    // Predicated region
    $region2: #{tpu_custom_call.1} parent=1 // pred_check
      _
    $region3: #{tpu_custom_call.1} parent=1 // pred_check_branch
      %12 = sbr.rel (0) target = $region5
    $region4: #{tpu_custom_call.1} parent=1 // pred_region
      %s14 = ssub.s32 256, 256
      %15 = vsyncadd [#allocation3], %s14
      %s16 = sshll.u32 [#allocation2], 4
      %s17 = int_to_ptr.vmem [resolvable:$true] %s16
      %22 = dma.hbm_to_vmem [thread:$0]  %s0, 256, %s17, [#allocation3], 128, 128, 8
    $region5: #{tpu_custom_call.1} parent=1 // pred_fallthru
      _
    // Predicated region
    $region6: #{tpu_custom_call.1} parent=1 // pred_check
      _
    $region7: #{tpu_custom_call.1} parent=1 // pred_check_branch
      %24 = sbr.rel (0) target = $region9
    $region8: #{tpu_custom_call.1} parent=1 // pred_region
      %s26 = ssub.s32 512, 512
      %27 = vsyncadd [#allocation6], %s26
      %s28 = sshll.u32 [#allocation5], 4
      %s29 = int_to_ptr.vmem [resolvable:$true] %s28
      %34 = dma.hbm_to_vmem [thread:$0]  %s1, 512, %s29, [#allocation6], 128, 128, 8
    $region9: #{tpu_custom_call.1} parent=1 // pred_fallthru
      _
    // Predicated region
    $region10: #{tpu_custom_call.1} parent=1 // pred_check
      _
    $region11: #{tpu_custom_call.1} parent=1 // pred_check_branch
      %36 = sbr.rel (0) target = $region13
    $region12: #{tpu_custom_call.1} parent=1 // pred_region
      _
    $region13: #{tpu_custom_call.1} parent=1 // pred_fallthru
      _
    // Predicated region
    $region14: #{tpu_custom_call.1} parent=1 // pred_check
      _
    $region15: #{tpu_custom_call.1} parent=1 // pred_check_branch
      %38 = sbr.rel (0) target = $region17
    $region16: #{tpu_custom_call.1} parent=1 // pred_region
      %39 = dma.done [#allocation3], 256
    $region17: #{tpu_custom_call.1} parent=1 // pred_fallthru
      _
    // Predicated region
    $region18: #{tpu_custom_call.1} parent=1 // pred_check
      _
    $region19: #{tpu_custom_call.1} parent=1 // pred_check_branch
      %41 = sbr.rel (0) target = $region21
    $region20: #{tpu_custom_call.1} parent=1 // pred_region
      %42 = dma.done [#allocation6], 512
    $region21: #{tpu_custom_call.1} parent=1 // pred_fallthru
      _
    %p43 = scmp.eq.s32.totalorder 0, 0
    // Predicated region
    $region22: #{tpu_custom_call.1} parent=1 // pred_check
      %p44 = pneg %p43
    $region23: #{tpu_custom_call.1} parent=1 // pred_check_branch
      %46 = sbr.rel (%p44) target = $region25
    $region24: #{tpu_custom_call.1} parent=1 // pred_region
      %vm47 = vcmask 523264
      %48 = vst.msk [vmem:[#allocation7] sm:$0xff] %vm47, 0.0
      %49 = vst.msk [vmem:[#allocation7 + $0x8] sm:$0xff] %vm47, 0.0
    $region25: #{tpu_custom_call.1} parent=1 // pred_fallthru
      _
    %v50 = vld [vmem:[#allocation7] sm:$0xff]
    %v51 = vld [vmem:[#allocation7 + $0x8] sm:$0xff]
    %v52 = vld [vmem:[#allocation2] sm:$0xff]
    %v53 = vld [vmem:[#allocation2 + $0x8] sm:$0xff]
    %v54 = vld [vmem:[#allocation5] sm:$0xff]
    %v55 = vld [vmem:[#allocation5 + $0x8] sm:$0xff]
    %v56 = vld [vmem:[#allocation5 + $0x10] sm:$0xff]
    %v57 = vld [vmem:[#allocation5 + $0x18] sm:$0xff]
    %vm58 = vcmask 261120
    %v60 = vsel %vm58, %v52, 0
    %v63 = vsel %vm58, %v53, 0
    %65 = vmatprep.subr.mxu0 0.0
    %66 = vmatpush1.msra.mxu0 %v54
    %67 = vmatprep.subr.mxu0 0.0
    %68 = vmatpush1.msra.mxu0 %v55
    %69 = vmatprep.subr.mxu0 0.0
    %70 = vmatpush1.msra.mxu0 %v56
    %71 = vmatprep.subr.mxu0 0.0
    %72 = vmatpush1.msra.mxu0 %v57
    %73 = vmatprep.subr.mxu0 0.0
    %74 = vmatpush1.msra.mxu0 0.0
    %75 = vmatprep.subr.mxu0 0.0
    %76 = vmatpush1.msra.mxu0 0.0
    %77 = vmatprep.subr.mxu0 0.0
    %78 = vmatpush1.msra.mxu0 0.0
    %79 = vmatprep.subr.mxu0 0.0
    %80 = vmatpush1.msra.mxu0 0.0
    %81 = vmatprep.subr.mxu0 0.0
    %82 = vmatpush1.msra.mxu0 0.0
    %83 = vmatprep.subr.mxu0 0.0
    %84 = vmatpush1.msra.mxu0 0.0
    %85 = vmatprep.subr.mxu0 0.0
    %86 = vmatpush1.msra.mxu0 0.0
    %87 = vmatprep.subr.mxu0 0.0
    %88 = vmatpush1.msra.mxu0 0.0
    %89 = vmatprep.subr.mxu0 0.0
    %90 = vmatpush1.msra.mxu0 0.0
    %91 = vmatprep.subr.mxu0 0.0
    %92 = vmatpush1.msra.mxu0 0.0
    %93 = vmatprep.subr.mxu0 0.0
    %94 = vmatpush1.msra.mxu0 0.0
    %95 = vmatprep.subr.mxu0 0.0
    %96 = vmatpush1.msra.mxu0 0.0
    %97 = vmatprep.subr.mxu0 0.0
    %98 = vmatpush1.msra.mxu0 0.0
    %99 = vmatprep.subr.mxu0 0.0
    %100 = vmatpush1.msra.mxu0 0.0
    %101 = vmatprep.subr.mxu0 0.0
    %102 = vmatpush1.msra.mxu0 0.0
    %103 = vmatprep.subr.mxu0 0.0
    %104 = vmatpush1.msra.mxu0 0.0
    %105 = vmatprep.subr.mxu0 0.0
    %106 = vmatpush1.msra.mxu0 0.0
    %107 = vmatprep.subr.mxu0 0.0
    %108 = vmatpush1.msra.mxu0 0.0
    %109 = vmatprep.subr.mxu0 0.0
    %110 = vmatpush1.msra.mxu0 0.0
    %111 = vmatprep.subr.mxu0 0.0
    %112 = vmatpush1.msra.mxu0 0.0
    %113 = vmatprep.subr.mxu0 0.0
    %114 = vmatpush1.msra.mxu0 0.0
    %115 = vmatprep.subr.mxu0 0.0
    %116 = vmatpush1.msra.mxu0 0.0
    %117 = vmatprep.subr.mxu0 0.0
    %118 = vmatpush1.msra.mxu0 0.0
    %119 = vmatprep.subr.mxu0 0.0
    %120 = vmatpush1.msra.mxu0 0.0
    %121 = vmatprep.subr.mxu0 0.0
    %122 = vmatpush1.msra.mxu0 0.0
    %123 = vmatprep.subr.mxu0 0.0
    %124 = vmatpush1.msra.mxu0 0.0
    %125 = vmatprep.subr.mxu0 0.0
    %126 = vmatpush1.msra.mxu0 0.0
    %127 = vmatprep.subr.mxu0 0.0
    %128 = vmatpush1.msra.mxu0 0.0
    %129 = vmatprep.mubr.f32.mxu0 0.0
    %130 = vmatmul.mubr.f32.gmra.mrb[0].mxu0 %v60
    %v131 = vpop.f32.mrb[0].mxu0
    %v132 = vadd.f32 0.0, %v131
    %v133 = vpop.f32.mrb[0].mxu0
    %134 = vmatprep.mubr.f32.mxu0 0.0
    %135 = vmatmul.mubr.f32.gmra.mrb[0].mxu0 %v63
    %v136 = vpop.f32.mrb[0].mxu0
    %v137 = vadd.f32 0.0, %v136
    %v138 = vpop.f32.mrb[0].mxu0
    %139 = vdwg.mxu0
    %v140 = vadd.f32 %v50, %v132
    %v141 = vadd.f32 %v51, %v137
    %vm142 = vcmask 523264
    %143 = vst.msk [vmem:[#allocation7] sm:$0xff] %vm142, %v140
    %144 = vst.msk [vmem:[#allocation7 + $0x8] sm:$0xff] %vm142, %v141
    // Predicated region
    $region26: #{tpu_custom_call.1} parent=1 // pred_check
      %p145 = pneg %p43
    $region27: #{tpu_custom_call.1} parent=1 // pred_check_branch
      %147 = sbr.rel (%p145) target = $region29
    $region28: #{tpu_custom_call.1} parent=1 // pred_region
      %v148 = vld [vmem:[#allocation7] sm:$0xff]
      %v149 = vld [vmem:[#allocation7 + $0x8] sm:$0xff]
      %v150 = vld [vmem:[%s2] sm:$0x1]
      %v152 = vlaneseq
      %v153 = vshrl.u32 %v152, 7
      %v154 = vsub.s32 0, %v153
      %v155 = vrot.slane %v150, %v154
      %v157 = vadd.f32 %v148, %v155
      %v158 = vadd.f32 %v149, %v155
      %159 = vst.msk [vmem:[#allocation7] sm:$0xff] %vm142, %v157
      %160 = vst.msk [vmem:[#allocation7 + $0x8] sm:$0xff] %vm142, %v158
    $region29: #{tpu_custom_call.1} parent=1 // pred_fallthru
      _
    // Predicated region
    $region30: #{tpu_custom_call.1} parent=1 // pred_check
      _
    $region31: #{tpu_custom_call.1} parent=1 // pred_check_branch
      %162 = sbr.rel (0) target = $region33
    $region32: #{tpu_custom_call.1} parent=1 // pred_region
      %s164 = ssub.s32 256, 256
      %165 = vsyncadd [#allocation4], %s164
      %s166 = sshll.u32 [#allocation7], 4
      %s167 = int_to_ptr.vmem [resolvable:$true] %s166
      %172 = dma.vmem_to_hbm [thread:$0]  %s167, 256, %s3, [#allocation4], 128, 128, 8
    $region33: #{tpu_custom_call.1} parent=1 // pred_fallthru
      _
    // Predicated region
    $region34: #{tpu_custom_call.1} parent=1 // pred_check
      _
    $region35: #{tpu_custom_call.1} parent=1 // pred_check_branch
      %174 = sbr.rel (0) target = $region37
    $region36: #{tpu_custom_call.1} parent=1 // pred_region
      %175 = dma.done [#allocation4], 256
    $region37: #{tpu_custom_call.1} parent=1 // pred_fallthru
      _
    %176 = vsyncpa [#allocation3], 1
    %177 = vsyncpa [#allocation6], 1
    %178 = vsyncpa [#allocation4], 1

</llo_original>
